<compile_context>
chip_gen: v7x
topology: tpu7x:2x2x1
jax: 0.10.0
libtpu: 0.0.40
codegen_flags: <defaults>
</compile_context>

<pallas_src>
import functools

import numpy as np
import jax
import jax.numpy as jnp
from jax.experimental import pallas as pl
from jax.experimental.pallas import tpu as pltpu


# ----------------------------------------------------------------------------
# Kernels
# ----------------------------------------------------------------------------
def _distance_onehot_kernel(edge_ref, post_ref, vec_ref, w_ref):
    """MXU one-hot gather, lane-dense orientation.

    edge_ref: (2, TE) int32   row 0 = src, row 1 = dst
    post_ref: (3, N)  float32 positions transposed (xyz on sublanes)
    vec_ref : (3, TE) float32 edge vectors (transposed)
    w_ref   : (1, TE) float32 edge norms (0 on self-loops)
    """
    idx = edge_ref[...]                      # (2, TE)
    pos_t = post_ref[...]                    # (3, N)
    n = pos_t.shape[1]
    te = idx.shape[1]

    src = idx[0:1, :]                        # (1, TE)
    dst = idx[1:2, :]                        # (1, TE)

    # Signed selector built in a single pass (no separate oh0/oh1 temporaries).
    # Self-loop columns cancel to exactly 0 -> vec == 0 exactly for self loops.
    rows = jax.lax.broadcasted_iota(jnp.int32, (n, te), 0)          # (N, TE)
    sel = (rows == src).astype(jnp.float32) - (rows == dst).astype(jnp.float32)

    # (3, N) @ (N, TE) -> (3, TE): output lands already lane-dense along E.
    # HIGHEST precision keeps the f32 positions exact through the MXU.
    vec_t = jnp.dot(pos_t, sel,
                    preferred_element_type=jnp.float32,
                    precision=jax.lax.Precision.HIGHEST)

    sq = jnp.sum(vec_t * vec_t, axis=0, keepdims=True)              # (1, TE)
    self_loop = src == dst
    w = jnp.where(self_loop, jnp.zeros_like(sq), jnp.sqrt(sq))      # (1, TE)

    vec_ref[...] = vec_t
    w_ref[...] = w


def _distance_pregather_kernel(ps_ref, pd_ref, vec_ref, w_ref):
    """Elementwise path for pre-gathered positions (large N).

    ps_ref / pd_ref: (3, TE) float32 = pos[src].T / pos[dst].T
    """
    vec = ps_ref[...] - pd_ref[...]                                  # (3, TE)
    sq = jnp.sum(vec * vec, axis=0, keepdims=True)                   # (1, TE)
    # Self-loop edges subtract identical rows -> vec == 0 exactly -> sqrt == 0,
    # matching the reference's masked-norm behaviour without an extra input.
    vec_ref[...] = vec
    w_ref[...] = jnp.sqrt(sq)


# ----------------------------------------------------------------------------
# pallas_call wrappers
# ----------------------------------------------------------------------------
def _distance_onehot(edge_index_t, pos_t, block_e):
    """edge_index_t: (2, Ep) int32, pos_t: (3, N) float32."""
    ep = edge_index_t.shape[1]
    n = pos_t.shape[1]
    grid = (ep // block_e,)
    return pl.pallas_call(
        _distance_onehot_kernel,
        out_shape=(
            jax.ShapeDtypeStruct((3, ep), jnp.float32),   # edge_vec (transposed)
            jax.ShapeDtypeStruct((1, ep), jnp.float32),   # edge_weight
        ),
        grid=grid,
        in_specs=[
            pl.BlockSpec((2, block_e), lambda i: (0, i)),
            pl.BlockSpec((3, n), lambda i: (0, 0)),       # (3,N): ~16x less VMEM than (N,3)
        ],
        out_specs=(
            pl.BlockSpec((3, block_e), lambda i: (0, i)),
            pl.BlockSpec((1, block_e), lambda i: (0, i)),
        ),
        compiler_params=pltpu.CompilerParams(dimension_semantics=("parallel",)),
    )(edge_index_t, pos_t)


def _distance_pregather(pos_src_t, pos_dst_t, block_e):
    """pos_src_t / pos_dst_t: (3, Ep) float32 pre-gathered slabs."""
    ep = pos_src_t.shape[1]
    grid = (ep // block_e,)
    return pl.pallas_call(
        _distance_pregather_kernel,
        out_shape=(
            jax.ShapeDtypeStruct((3, ep), jnp.float32),
            jax.ShapeDtypeStruct((1, ep), jnp.float32),
        ),
        grid=grid,
        in_specs=[
            pl.BlockSpec((3, block_e), lambda i: (0, i)),
            pl.BlockSpec((3, block_e), lambda i: (0, i)),
        ],
        out_specs=(
            pl.BlockSpec((3, block_e), lambda i: (0, i)),
            pl.BlockSpec((1, block_e), lambda i: (0, i)),
        ),
        compiler_params=pltpu.CompilerParams(dimension_semantics=("parallel",)),
    )(pos_src_t, pos_dst_t)


def _round_up(x, m):
    return ((x + m - 1) // m) * m


def _choose_block_e_onehot(E, N):
    # Largest lane-dense block such that the (N, block_e) f32 selector stays
    # well inside the default scoped VMEM budget on every generation (v7x: 32 MiB).
    be = 1024
    while be > 128 and N * be * 4 > (8 << 20):
        be //= 2
    return min(be, max(128, _round_up(E, 128)))


def _choose_block_e_pregather(E):
    # Pure elementwise: take large lane-dense blocks (per-step overhead ~0.35us).
    return min(2048, max(128, _round_up(E, 128)))


# ----------------------------------------------------------------------------
# Module
# ----------------------------------------------------------------------------
class Distance:
    """JAX/Pallas port of the PyTorch Distance module (no learnable params)."""

    _PREGATHER_NODE_THRESHOLD = 4096

    def __init__(self, cutoff_lower, cutoff_upper, return_vecs=False,
                 gather_mode="auto"):
        assert gather_mode in ("auto", "onehot", "pregather")
        self.cutoff_lower = float(cutoff_lower)
        self.cutoff_upper = float(cutoff_upper)
        self.return_vecs = return_vecs
        self.gather_mode = gather_mode

    def __call__(self, data):
        edge_index = jnp.asarray(data["edge_index"], dtype=jnp.int32)   # (2, E)
        pos = jnp.asarray(data["pos"], dtype=jnp.float32)               # (N, 3)
        E = edge_index.shape[1]
        N = pos.shape[0]

        mode = self.gather_mode
        if mode == "auto":
            mode = "pregather" if N > self._PREGATHER_NODE_THRESHOLD else "onehot"

        pos_t = pos.T                                                    # (3, N)

        if mode == "onehot":
            block_e = _choose_block_e_onehot(E, N)
            ep = _round_up(E, block_e)
            # Pad with (0, 0) edges: they behave as self-loops and are sliced
            # off ([:E]) before the host-side mask, so they never leak through.
            idx_t = jnp.zeros((2, ep), jnp.int32).at[:, :E].set(edge_index)
            vec_t, w = _distance_onehot(idx_t, pos_t, block_e)
        else:
            block_e = _choose_block_e_pregather(E)
            ep = _round_up(E, block_e)
            src = jnp.zeros((ep,), jnp.int32).at[:E].set(edge_index[0])
            dst = jnp.zeros((ep,), jnp.int32).at[:E].set(edge_index[1])
            ps = jnp.take(pos_t, src, axis=1)                            # (3, Ep)
            pd = jnp.take(pos_t, dst, axis=1)                            # (3, Ep)
            vec_t, w = _distance_pregather(ps, pd, block_e)

        vec_t = vec_t[:, :E]                                             # (3, E)
        w = w[0, :E]                                                     # (E,)

        # Single batched D2H transfer; data-dependent boolean compaction
        # (edge_index[:, mask]) has a dynamic output shape -> done on host.
        vec_np, w_np, ei_np = jax.device_get((vec_t, w, edge_index))
        vec_np = np.asarray(vec_np)
        w_np = np.asarray(w_np)
        ei_np = np.asarray(ei_np)

        lower = w_np >= self.cutoff_lower
        edge_index_out = ei_np[:, lower]
        edge_weight_out = np.clip(w_np[lower], 1e-8, None)
        if self.return_vecs:
            return edge_index_out, edge_weight_out, vec_np.T[lower]
        return edge_index_out, edge_weight_out, None


# ----------------------------------------------------------------------------
# Reference + test
# ----------------------------------------------------------------------------
def _reference(edge_index, pos, cutoff_lower, return_vecs):
    ei = np.asarray(edge_index)
    p = np.asarray(pos, dtype=np.float32)
    vec = p[ei[0]] - p[ei[1]]
    mask = ei[0] != ei[1]
    w = np.zeros(vec.shape[0], dtype=np.float32)
    w[mask] = np.linalg.norm(vec[mask], axis=-1)
    lower = w >= cutoff_lower
    out_ei = ei[:, lower]
    out_w = np.clip(w[lower], 1e-8, None)
    if return_vecs:
        return out_ei, out_w, vec[lower]
    return out_ei, out_w, None


if __name__ == "__main__":
    key = jax.random.PRNGKey(0)
    k_pos, k_src, k_dst = jax.random.split(key, 3)

    N = 16   # nodes
    E = 32   # edges
    pos = jax.random.normal(k_pos, (N, 3), dtype=jnp.float32) * 2.0
    src = jax.random.randint(k_src, (E,), 0, N, dtype=jnp.int32)
    dst = jax.random.randint(k_dst, (E,), 0, N, dtype=jnp.int32)
    # force a few self-loops to exercise the self-loop path
    src = src.at[0].set(3)
    dst = dst.at[0].set(3)
    src = src.at[5].set(7)
    dst = dst.at[5].set(7)
    edge_index = jnp.stack([src, dst], axis=0)   # (2, E) int32

    data = {"edge_index": edge_index, "pos": pos}
    ref_ei, ref_w, ref_vec = _reference(edge_index, pos, 0.5, True)

    # exercise both gather paths
    for mode in ("onehot", "pregather"):
        module = Distance(cutoff_lower=0.5, cutoff_upper=5.0,
                          return_vecs=True, gather_mode=mode)
        out_ei, out_w, out_vec = module(data)
        jax.block_until_ready(jnp.asarray(out_w))

        assert out_ei.shape == ref_ei.shape and np.array_equal(out_ei, ref_ei), mode
        np.testing.assert_allclose(out_w, ref_w, rtol=1e-5, atol=1e-6)
        np.testing.assert_allclose(out_vec, ref_vec, rtol=1e-5, atol=1e-6)

    # also check the return_vecs=False branch (auto mode)
    module2 = Distance(cutoff_lower=0.5, cutoff_upper=5.0, return_vecs=False)
    out_ei2, out_w2, none_vec = module2(data)
    assert none_vec is None
    np.testing.assert_allclose(out_w2, ref_w, rtol=1e-5, atol=1e-6)

    print("KERNEL_OK")
</pallas_src>

<mosaic_0001>
module attributes {stable_mosaic.version = 11 : i64} {
  func.func @_distance_onehot_kernel(%arg0: i32, %arg1: memref<2x128xi32, #tpu.memory_space<vmem>>, %arg2: memref<3x16xf32, #tpu.memory_space<vmem>>, %arg3: memref<3x128xf32, #tpu.memory_space<vmem>>, %arg4: memref<1x128xf32, #tpu.memory_space<vmem>>) attributes {dimension_semantics = [#tpu.dimension_semantics<parallel>], iteration_bounds = array<i64: 1>, scalar_prefetch = 0 : i64, scratch_operands = 0 : i64, tpu.core_type = #tpu.core_type<tc>, window_params = [{transform_indices = @transform_0, window_bounds = array<i64: 2, 128>}, {pipeline_mode = #tpu.pipeline_mode<synchronous>, transform_indices = @transform_1, window_bounds = array<i64: 3, 16>}, {transform_indices = @transform_2, window_bounds = array<i64: 3, 128>}, {transform_indices = @transform_3, window_bounds = array<i64: 1, 128>}]} {
    %c0 = arith.constant 0 : index
    %c0_0 = arith.constant 0 : index
    %0 = vector.load %arg1[%c0, %c0_0] : memref<2x128xi32, #tpu.memory_space<vmem>>, vector<2x128xi32>
    %c0_1 = arith.constant 0 : index
    %c0_2 = arith.constant 0 : index
    %1 = vector.load %arg2[%c0_1, %c0_2] : memref<3x16xf32, #tpu.memory_space<vmem>>, vector<3x16xf32>
    %2 = vector.extract_strided_slice %0 {offsets = [0, 0], sizes = [1, 128], strides = [1, 1]} : vector<2x128xi32> to vector<1x128xi32>
    %3 = vector.extract_strided_slice %0 {offsets = [1, 0], sizes = [1, 128], strides = [1, 1]} : vector<2x128xi32> to vector<1x128xi32>
    %4 = tpu.iota {dimensions = array<i32: 0>} : vector<16x128xi32>
    %5 = vector.broadcast %2 : vector<1x128xi32> to vector<16x128xi32>
    %6 = arith.cmpi eq, %4, %5 : vector<16x128xi32>
    %7 = arith.extui %6 : vector<16x128xi1> to vector<16x128xi32>
    %8 = arith.sitofp %7 : vector<16x128xi32> to vector<16x128xf32>
    %9 = vector.broadcast %3 : vector<1x128xi32> to vector<16x128xi32>
    %10 = arith.cmpi eq, %4, %9 : vector<16x128xi32>
    %11 = arith.extui %10 : vector<16x128xi1> to vector<16x128xi32>
    %12 = arith.sitofp %11 : vector<16x128xi32> to vector<16x128xf32>
    %13 = arith.subf %8, %12 : vector<16x128xf32>
    %cst = arith.constant dense<0.000000e+00> : vector<3x128xf32>
    %14 = tpu.matmul %1, %13, %cst {dimension_numbers = #tpu.dot_dimension_numbers<[1], [0], [0], [1], [0, 0, 1, 1], [], []>, precision = #tpu.contract_precision<fp32>} : vector<3x16xf32>, vector<16x128xf32>, vector<3x128xf32> -> vector<3x128xf32>
    %15 = arith.mulf %14, %14 : vector<3x128xf32>
    %cst_3 = arith.constant dense<0.000000e+00> : vector<128xf32>
    %16 = vector.multi_reduction <add>, %15, %cst_3 [0] : vector<3x128xf32> to vector<128xf32>
    %17 = vector.shape_cast %16 : vector<128xf32> to vector<1x128xf32>
    %18 = arith.cmpi eq, %2, %3 : vector<1x128xi32>
    %cst_4 = arith.constant 0.000000e+00 : f32
    %19 = vector.broadcast %cst_4 : f32 to vector<1x128xf32>
    %20 = math.sqrt %17 : vector<1x128xf32>
    %21 = arith.select %18, %19, %20 : vector<1x128xi1>, vector<1x128xf32>
    %c0_5 = arith.constant 0 : index
    %c0_6 = arith.constant 0 : index
    %22 = vector.load %arg3[%c0_5, %c0_6] : memref<3x128xf32, #tpu.memory_space<vmem>>, vector<3x128xf32>
    tpu.vector_store %arg3[%c0_5, %c0_6], %14 {strides = array<i32>} : memref<3x128xf32, #tpu.memory_space<vmem>>, vector<3x128xf32>,
    %c0_7 = arith.constant 0 : index
    %c0_8 = arith.constant 0 : index
    %23 = vector.load %arg4[%c0_7, %c0_8] : memref<1x128xf32, #tpu.memory_space<vmem>>, vector<1x128xf32>
    tpu.vector_store %arg4[%c0_7, %c0_8], %21 {strides = array<i32>} : memref<1x128xf32, #tpu.memory_space<vmem>>, vector<1x128xf32>,
    return
  }
  func.func @transform_0(%arg0: i32) -> (i32, i32) {
    %c0_i32 = arith.constant 0 : i32
    %c0_i32_0 = arith.constant 0 : i32
    return %c0_i32, %arg0 : i32, i32
  }
  func.func @transform_1(%arg0: i32) -> (i32, i32) {
    %c0_i32 = arith.constant 0 : i32
    %c0_i32_0 = arith.constant 0 : i32
    %c0_i32_1 = arith.constant 0 : i32
    return %c0_i32, %c0_i32_0 : i32, i32
  }
  func.func @transform_2(%arg0: i32) -> (i32, i32) {
    %c0_i32 = arith.constant 0 : i32
    %c0_i32_0 = arith.constant 0 : i32
    return %c0_i32, %arg0 : i32, i32
  }
  func.func @transform_3(%arg0: i32) -> (i32, i32) {
    %c0_i32 = arith.constant 0 : i32
    %c0_i32_0 = arith.constant 0 : i32
    return %c0_i32, %arg0 : i32, i32
  }
}

</mosaic_0001>

<llo_original>
// kernel: tpu_custom_call.1
$region0: #{tpu_custom_call.1}
  #allocation0 [shape = 'u32[]', space=smem, size = 0x4, offset = 0x4, fixed_abs, tag = 'smem constant byte address 0x4 - core index']
  #allocation1 [shape = 'u32[144,128]{1,0:T(1,128)}', space=vmem, size = 0x12000, scoped, tag = 'internal scratch']
  %s0 = inlined_call_operand.hbm [shape: s32[2,128], index: 0, kind: input, shape index: {}]
  %s1 = inlined_call_operand.hbm [shape: f32[3,16], index: 1, kind: input, shape index: {}]
  %s2 = inlined_call_operand.hbm [shape: f32[3,128], index: 2, kind: output, shape index: {0}]
  %s3 = inlined_call_operand.hbm [shape: f32[1,128], index: 3, kind: output, shape index: {1}]
  %4 = xla_tuple %s2, %s3
  %s5 = sld [smem:[#allocation0]]
  $region34: #{tpu_custom_call.1} parent=0
    _
  %s7 = ssub.s32 1, %s5
  %s8 = scalar_select 0, %s7, %s5
  $region1: #{tpu_custom_call.1} parent=0
    #allocation2 [shape = 'u8[1024]{0}', space=vmem, size = 0x400, scoped, tag = 'input window, operand 0, single buffered']
    #allocation3 [shape = 's32[1]{0}', space=sflag, size = 0x4, scoped, tag = 'scoped memory for tpu_custom_call.1']
    #allocation4 [shape = 's32[1]{0}', space=sflag, size = 0x4, scoped, tag = 'scoped memory for tpu_custom_call.1']
    #allocation5 [shape = 'u8[2048]{0}', space=vmem, size = 0x800, scoped, tag = 'input window, operand 1, single buffered']
    #allocation6 [shape = 's32[1]{0}', space=sflag, size = 0x4, scoped, tag = 'scoped memory for tpu_custom_call.1']
    #allocation7 [shape = 'u8[2048]{0}', space=vmem, size = 0x800, scoped, tag = 'output window, operand 0, single buffered']
    #allocation8 [shape = 'u8[512]{0}', space=vmem, size = 0x400, scoped, tag = 'output window, operand 1, single buffered']
    #allocation9 [shape = 's32[1]{0}', space=sflag, size = 0x4, scoped, tag = 'scoped memory for tpu_custom_call.1']
    %9 = vsyncpa [#allocation3], 0
    %10 = vsyncpa [#allocation6], 0
    %11 = vsyncpa [#allocation4], 0
    %12 = vsyncpa [#allocation9], 0
    // Predicated region
    $region2: #{tpu_custom_call.1} parent=1 // pred_check
      _
    $region3: #{tpu_custom_call.1} parent=1 // pred_check_branch
      %14 = sbr.rel (0) target = $region5
    $region4: #{tpu_custom_call.1} parent=1 // pred_region
      %s16 = ssub.s32 32, 32
      %17 = vsyncadd [#allocation3], %s16
      %s19 = sshll.u32 [#allocation2], 4
      %s20 = int_to_ptr.vmem [resolvable:$true] %s19
      %22 = dma.hbm_to_vmem [thread:$0]  %s0, 32, %s20, [#allocation3]
    $region5: #{tpu_custom_call.1} parent=1 // pred_fallthru
      _
    // Predicated region
    $region6: #{tpu_custom_call.1} parent=1 // pred_check
      _
    $region7: #{tpu_custom_call.1} parent=1 // pred_check_branch
      %24 = sbr.rel (0) target = $region9
    $region8: #{tpu_custom_call.1} parent=1 // pred_region
      %s26 = ssub.s32 64, 64
      %27 = vsyncadd [#allocation6], %s26
      %s29 = sshll.u32 [#allocation5], 4
      %s30 = int_to_ptr.vmem [resolvable:$true] %s29
      %32 = dma.hbm_to_vmem [thread:$0]  %s1, 64, %s30, [#allocation6]
    $region9: #{tpu_custom_call.1} parent=1 // pred_fallthru
      _
    // Predicated region
    $region10: #{tpu_custom_call.1} parent=1 // pred_check
      _
    $region11: #{tpu_custom_call.1} parent=1 // pred_check_branch
      %34 = sbr.rel (0) target = $region13
    $region12: #{tpu_custom_call.1} parent=1 // pred_region
      %35 = dma.done [#allocation3], 32
    $region13: #{tpu_custom_call.1} parent=1 // pred_fallthru
      _
    // Predicated region
    $region14: #{tpu_custom_call.1} parent=1 // pred_check
      _
    $region15: #{tpu_custom_call.1} parent=1 // pred_check_branch
      %37 = sbr.rel (0) target = $region17
    $region16: #{tpu_custom_call.1} parent=1 // pred_region
      %38 = dma.done [#allocation6], 64
    $region17: #{tpu_custom_call.1} parent=1 // pred_fallthru
      _
    %v39 = vld [vmem:[#allocation2] sm:$0x3]
    %v40 = vld [vmem:[#allocation5] sm:$0x7]
    %v41 = vlaneseq
    %v42 = vshrl.u32 %v41, 7
    %v43 = vadd.s32 %v42, 8
    %v44 = vlaneseq
    %v45 = vshrl.u32 %v44, 7
    %v46 = vsub.s32 0, %v45
    %v47 = vrot.slane %v39, %v46
    %vm48 = vcmp.eq.s32.totalorder %v42, %v47
    %vm49 = vcmp.eq.s32.totalorder %v43, %v47
    %v50 = vsel %vm48, 1, 0
    %v51 = vsel %vm49, 1, 0
    %v52 = vcvt.s32.f32 %v50
    %v53 = vcvt.s32.f32 %v51
    %v54 = vlaneseq
    %v55 = vshrl.u32 %v54, 7
    %v56 = vsub.s32 1, %v55
    %v57 = vrot.slane %v39, %v56
    %vm58 = vcmp.eq.s32.totalorder %v42, %v57
    %vm59 = vcmp.eq.s32.totalorder %v43, %v57
    %v60 = vsel %vm58, 1, 0
    %v61 = vsel %vm59, 1, 0
    %v62 = vcvt.s32.f32 %v60
    %v63 = vcvt.s32.f32 %v61
    %v64 = vsub.f32 %v52, %v62
    %v65 = vsub.f32 %v53, %v63
    %vm66 = vcmask 130048
    %v68 = vsel %vm66, %v40, 0
    %70 = vmatprep.subr.mxu0 0.0
    %v71 = vand.u32 %v64, 4294901760
    %72 = vmatpush1.msra.mxu0 %v71
    %73 = vmatprep.subr.mxu0 0.0
    %v74 = vand.u32 %v65, 4294901760
    %75 = vmatpush1.msra.mxu0 %v74
    %76 = vmatprep.subr.mxu0 0.0
    %77 = vmatpush1.msra.mxu0 0.0
    %78 = vmatprep.subr.mxu0 0.0
    %79 = vmatpush1.msra.mxu0 0.0
    %80 = vmatprep.subr.mxu0 0.0
    %81 = vmatpush1.msra.mxu0 0.0
    %82 = vmatprep.subr.mxu0 0.0
    %83 = vmatpush1.msra.mxu0 0.0
    %84 = vmatprep.subr.mxu0 0.0
    %85 = vmatpush1.msra.mxu0 0.0
    %86 = vmatprep.subr.mxu0 0.0
    %87 = vmatpush1.msra.mxu0 0.0
    %88 = vmatprep.subr.mxu0 0.0
    %89 = vmatpush1.msra.mxu0 0.0
    %90 = vmatprep.subr.mxu0 0.0
    %91 = vmatpush1.msra.mxu0 0.0
    %92 = vmatprep.subr.mxu0 0.0
    %93 = vmatpush1.msra.mxu0 0.0
    %94 = vmatprep.subr.mxu0 0.0
    %95 = vmatpush1.msra.mxu0 0.0
    %96 = vmatprep.subr.mxu0 0.0
    %97 = vmatpush1.msra.mxu0 0.0
    %98 = vmatprep.subr.mxu0 0.0
    %99 = vmatpush1.msra.mxu0 0.0
    %100 = vmatprep.subr.mxu0 0.0
    %101 = vmatpush1.msra.mxu0 0.0
    %102 = vmatprep.subr.mxu0 0.0
    %103 = vmatpush1.msra.mxu0 0.0
    %104 = vmatprep.subr.mxu0 0.0
    %105 = vmatpush1.msra.mxu0 0.0
    %106 = vmatprep.subr.mxu0 0.0
    %107 = vmatpush1.msra.mxu0 0.0
    %108 = vmatprep.subr.mxu0 0.0
    %109 = vmatpush1.msra.mxu0 0.0
    %110 = vmatprep.subr.mxu0 0.0
    %111 = vmatpush1.msra.mxu0 0.0
    %112 = vmatprep.subr.mxu0 0.0
    %113 = vmatpush1.msra.mxu0 0.0
    %114 = vmatprep.subr.mxu0 0.0
    %115 = vmatpush1.msra.mxu0 0.0
    %116 = vmatprep.subr.mxu0 0.0
    %117 = vmatpush1.msra.mxu0 0.0
    %118 = vmatprep.subr.mxu0 0.0
    %119 = vmatpush1.msra.mxu0 0.0
    %120 = vmatprep.subr.mxu0 0.0
    %121 = vmatpush1.msra.mxu0 0.0
    %122 = vmatprep.subr.mxu0 0.0
    %123 = vmatpush1.msra.mxu0 0.0
    %124 = vmatprep.subr.mxu0 0.0
    %125 = vmatpush1.msra.mxu0 0.0
    %126 = vmatprep.subr.mxu0 0.0
    %127 = vmatpush1.msra.mxu0 0.0
    %128 = vmatprep.subr.mxu0 0.0
    %129 = vmatpush1.msra.mxu0 0.0
    %130 = vmatprep.subr.mxu0 0.0
    %131 = vmatpush1.msra.mxu0 0.0
    %132 = vmatprep.subr.mxu0 0.0
    %133 = vmatpush1.msra.mxu0 0.0
    %134 = vmatprep.subr.mxu0 0.0
    %135 = vmatpush1.msra.mxu0 0.0
    %136 = vmatprep.mubr.f32.mxu0 0.0
    %v137 = vand.u32 %v68, 4294901760
    %v138 = vsub.f32 %v68, %v137
    %v139 = vand.u32 %v138, 4294901760
    %v140 = vsub.f32 %v138, %v139
    %v141 = vand.u32 %v140, 4294901760
    %142 = vmatmul.mubr.f32.gmra.mrb[0].mxu0 %v141
    %v143 = vpop.f32.mrb[0].mxu0
    %v144 = vadd.f32 0.0, %v143
    %v145 = vpop.f32.mrb[0].mxu0
    %146 = vdwg.mxu0
    %147 = vmatprep.subr.mxu0 0.0
    %v148 = vand.u32 %v64, 4294901760
    %v149 = vsub.f32 %v64, %v148
    %v150 = vand.u32 %v149, 4294901760
    %v151 = vsub.f32 %v149, %v150
    %v152 = vand.u32 %v151, 4294901760
    %153 = vmatpush1.msra.mxu0 %v152
    %154 = vmatprep.subr.mxu0 0.0
    %v155 = vand.u32 %v65, 4294901760
    %v156 = vsub.f32 %v65, %v155
    %v157 = vand.u32 %v156, 4294901760
    %v158 = vsub.f32 %v156, %v157
    %v159 = vand.u32 %v158, 4294901760
    %160 = vmatpush1.msra.mxu0 %v159
    %161 = vmatprep.subr.mxu0 0.0
    %162 = vmatpush1.msra.mxu0 0.0
    %163 = vmatprep.subr.mxu0 0.0
    %164 = vmatpush1.msra.mxu0 0.0
    %165 = vmatprep.subr.mxu0 0.0
    %166 = vmatpush1.msra.mxu0 0.0
    %167 = vmatprep.subr.mxu0 0.0
    %168 = vmatpush1.msra.mxu0 0.0
    %169 = vmatprep.subr.mxu0 0.0
    %170 = vmatpush1.msra.mxu0 0.0
    %171 = vmatprep.subr.mxu0 0.0
    %172 = vmatpush1.msra.mxu0 0.0
    %173 = vmatprep.subr.mxu0 0.0
    %174 = vmatpush1.msra.mxu0 0.0
    %175 = vmatprep.subr.mxu0 0.0
    %176 = vmatpush1.msra.mxu0 0.0
    %177 = vmatprep.subr.mxu0 0.0
    %178 = vmatpush1.msra.mxu0 0.0
    %179 = vmatprep.subr.mxu0 0.0
    %180 = vmatpush1.msra.mxu0 0.0
    %181 = vmatprep.subr.mxu0 0.0
    %182 = vmatpush1.msra.mxu0 0.0
    %183 = vmatprep.subr.mxu0 0.0
    %184 = vmatpush1.msra.mxu0 0.0
    %185 = vmatprep.subr.mxu0 0.0
    %186 = vmatpush1.msra.mxu0 0.0
    %187 = vmatprep.subr.mxu0 0.0
    %188 = vmatpush1.msra.mxu0 0.0
    %189 = vmatprep.subr.mxu0 0.0
    %190 = vmatpush1.msra.mxu0 0.0
    %191 = vmatprep.subr.mxu0 0.0
    %192 = vmatpush1.msra.mxu0 0.0
    %193 = vmatprep.subr.mxu0 0.0
    %194 = vmatpush1.msra.mxu0 0.0
    %195 = vmatprep.subr.mxu0 0.0
    %196 = vmatpush1.msra.mxu0 0.0
    %197 = vmatprep.subr.mxu0 0.0
    %198 = vmatpush1.msra.mxu0 0.0
    %199 = vmatprep.subr.mxu0 0.0
    %200 = vmatpush1.msra.mxu0 0.0
    %201 = vmatprep.subr.mxu0 0.0
    %202 = vmatpush1.msra.mxu0 0.0
    %203 = vmatprep.subr.mxu0 0.0
    %204 = vmatpush1.msra.mxu0 0.0
    %205 = vmatprep.subr.mxu0 0.0
    %206 = vmatpush1.msra.mxu0 0.0
    %207 = vmatprep.subr.mxu0 0.0
    %208 = vmatpush1.msra.mxu0 0.0
    %209 = vmatprep.subr.mxu0 0.0
    %210 = vmatpush1.msra.mxu0 0.0
    %211 = vmatprep.subr.mxu0 0.0
    %212 = vmatpush1.msra.mxu0 0.0
    %213 = vmatprep.subr.mxu0 0.0
    %214 = vmatpush1.msra.mxu0 0.0
    %215 = vmatprep.subr.mxu0 0.0
    %216 = vmatpush1.msra.mxu0 0.0
    %217 = vmatprep.subr.mxu0 0.0
    %218 = vmatpush1.msra.mxu0 0.0
    %219 = vmatprep.subr.mxu0 0.0
    %220 = vmatpush1.msra.mxu0 0.0
    %221 = vmatprep.mubr.f32.mxu0 0.0
    %v222 = vand.u32 %v68, 4294901760
    %223 = vmatmul.mubr.f32.gmra.mrb[0].mxu0 %v222
    %v224 = vpop.f32.mrb[0].mxu0
    %v225 = vadd.f32 %v144, %v224
    %v226 = vpop.f32.mrb[0].mxu0
    %227 = vdwg.mxu0
    %228 = vmatprep.subr.mxu0 0.0
    %v229 = vand.u32 %v64, 4294901760
    %v230 = vsub.f32 %v64, %v229
    %231 = vmatpush1.msra.mxu0 %v230
    %232 = vmatprep.subr.mxu0 0.0
    %v233 = vand.u32 %v65, 4294901760
    %v234 = vsub.f32 %v65, %v233
    %235 = vmatpush1.msra.mxu0 %v234
    %236 = vmatprep.subr.mxu0 0.0
    %237 = vmatpush1.msra.mxu0 0.0
    %238 = vmatprep.subr.mxu0 0.0
    %239 = vmatpush1.msra.mxu0 0.0
    %240 = vmatprep.subr.mxu0 0.0
    %241 = vmatpush1.msra.mxu0 0.0
    %242 = vmatprep.subr.mxu0 0.0
    %243 = vmatpush1.msra.mxu0 0.0
    %244 = vmatprep.subr.mxu0 0.0
    %245 = vmatpush1.msra.mxu0 0.0
    %246 = vmatprep.subr.mxu0 0.0
    %247 = vmatpush1.msra.mxu0 0.0
    %248 = vmatprep.subr.mxu0 0.0
    %249 = vmatpush1.msra.mxu0 0.0
    %250 = vmatprep.subr.mxu0 0.0
    %251 = vmatpush1.msra.mxu0 0.0
    %252 = vmatprep.subr.mxu0 0.0
    %253 = vmatpush1.msra.mxu0 0.0
    %254 = vmatprep.subr.mxu0 0.0
    %255 = vmatpush1.msra.mxu0 0.0
    %256 = vmatprep.subr.mxu0 0.0
    %257 = vmatpush1.msra.mxu0 0.0
    %258 = vmatprep.subr.mxu0 0.0
    %259 = vmatpush1.msra.mxu0 0.0
    %260 = vmatprep.subr.mxu0 0.0
    %261 = vmatpush1.msra.mxu0 0.0
    %262 = vmatprep.subr.mxu0 0.0
    %263 = vmatpush1.msra.mxu0 0.0
    %264 = vmatprep.subr.mxu0 0.0
    %265 = vmatpush1.msra.mxu0 0.0
    %266 = vmatprep.subr.mxu0 0.0
    %267 = vmatpush1.msra.mxu0 0.0
    %268 = vmatprep.subr.mxu0 0.0
    %269 = vmatpush1.msra.mxu0 0.0
    %270 = vmatprep.subr.mxu0 0.0
    %271 = vmatpush1.msra.mxu0 0.0
    %272 = vmatprep.subr.mxu0 0.0
    %273 = vmatpush1.msra.mxu0 0.0
    %274 = vmatprep.subr.mxu0 0.0
    %275 = vmatpush1.msra.mxu0 0.0
    %276 = vmatprep.subr.mxu0 0.0
    %277 = vmatpush1.msra.mxu0 0.0
    %278 = vmatprep.subr.mxu0 0.0
    %279 = vmatpush1.msra.mxu0 0.0
    %280 = vmatprep.subr.mxu0 0.0
    %281 = vmatpush1.msra.mxu0 0.0
    %282 = vmatprep.subr.mxu0 0.0
    %283 = vmatpush1.msra.mxu0 0.0
    %284 = vmatprep.subr.mxu0 0.0
    %285 = vmatpush1.msra.mxu0 0.0
    %286 = vmatprep.subr.mxu0 0.0
    %287 = vmatpush1.msra.mxu0 0.0
    %288 = vmatprep.subr.mxu0 0.0
    %289 = vmatpush1.msra.mxu0 0.0
    %290 = vmatprep.subr.mxu0 0.0
    %291 = vmatpush1.msra.mxu0 0.0
    %292 = vmatprep.subr.mxu0 0.0
    %293 = vmatpush1.msra.mxu0 0.0
    %294 = vmatprep.subr.mxu0 0.0
    %295 = vmatpush1.msra.mxu0 0.0
    %296 = vmatprep.mubr.f32.mxu0 0.0
    %v297 = vand.u32 %v68, 4294901760
    %v298 = vsub.f32 %v68, %v297
    %299 = vmatmul.mubr.f32.gmra.mrb[0].mxu0 %v298
    %v300 = vpop.f32.mrb[0].mxu0
    %v301 = vadd.f32 %v225, %v300
    %v302 = vpop.f32.mrb[0].mxu0
    %303 = vdwg.mxu0
    %304 = vmatprep.subr.mxu0 0.0
    %v305 = vand.u32 %v64, 4294901760
    %306 = vmatpush1.msra.mxu0 %v305
    %307 = vmatprep.subr.mxu0 0.0
    %v308 = vand.u32 %v65, 4294901760
    %309 = vmatpush1.msra.mxu0 %v308
    %310 = vmatprep.subr.mxu0 0.0
    %311 = vmatpush1.msra.mxu0 0.0
    %312 = vmatprep.subr.mxu0 0.0
    %313 = vmatpush1.msra.mxu0 0.0
    %314 = vmatprep.subr.mxu0 0.0
    %315 = vmatpush1.msra.mxu0 0.0
    %316 = vmatprep.subr.mxu0 0.0
    %317 = vmatpush1.msra.mxu0 0.0
    %318 = vmatprep.subr.mxu0 0.0
    %319 = vmatpush1.msra.mxu0 0.0
    %320 = vmatprep.subr.mxu0 0.0
    %321 = vmatpush1.msra.mxu0 0.0
    %322 = vmatprep.subr.mxu0 0.0
    %323 = vmatpush1.msra.mxu0 0.0
    %324 = vmatprep.subr.mxu0 0.0
    %325 = vmatpush1.msra.mxu0 0.0
    %326 = vmatprep.subr.mxu0 0.0
    %327 = vmatpush1.msra.mxu0 0.0
    %328 = vmatprep.subr.mxu0 0.0
    %329 = vmatpush1.msra.mxu0 0.0
    %330 = vmatprep.subr.mxu0 0.0
    %331 = vmatpush1.msra.mxu0 0.0
    %332 = vmatprep.subr.mxu0 0.0
    %333 = vmatpush1.msra.mxu0 0.0
    %334 = vmatprep.subr.mxu0 0.0
    %335 = vmatpush1.msra.mxu0 0.0
    %336 = vmatprep.subr.mxu0 0.0
    %337 = vmatpush1.msra.mxu0 0.0
    %338 = vmatprep.subr.mxu0 0.0
    %339 = vmatpush1.msra.mxu0 0.0
    %340 = vmatprep.subr.mxu0 0.0
    %341 = vmatpush1.msra.mxu0 0.0
    %342 = vmatprep.subr.mxu0 0.0
    %343 = vmatpush1.msra.mxu0 0.0
    %344 = vmatprep.subr.mxu0 0.0
    %345 = vmatpush1.msra.mxu0 0.0
    %346 = vmatprep.subr.mxu0 0.0
    %347 = vmatpush1.msra.mxu0 0.0
    %348 = vmatprep.subr.mxu0 0.0
    %349 = vmatpush1.msra.mxu0 0.0
    %350 = vmatprep.subr.mxu0 0.0
    %351 = vmatpush1.msra.mxu0 0.0
    %352 = vmatprep.subr.mxu0 0.0
    %353 = vmatpush1.msra.mxu0 0.0
    %354 = vmatprep.subr.mxu0 0.0
    %355 = vmatpush1.msra.mxu0 0.0
    %356 = vmatprep.subr.mxu0 0.0
    %357 = vmatpush1.msra.mxu0 0.0
    %358 = vmatprep.subr.mxu0 0.0
    %359 = vmatpush1.msra.mxu0 0.0
    %360 = vmatprep.subr.mxu0 0.0
    %361 = vmatpush1.msra.mxu0 0.0
    %362 = vmatprep.subr.mxu0 0.0
    %363 = vmatpush1.msra.mxu0 0.0
    %364 = vmatprep.subr.mxu0 0.0
    %365 = vmatpush1.msra.mxu0 0.0
    %366 = vmatprep.subr.mxu0 0.0
    %367 = vmatpush1.msra.mxu0 0.0
    %368 = vmatprep.subr.mxu0 0.0
    %369 = vmatpush1.msra.mxu0 0.0
    %370 = vmatprep.mubr.f32.mxu0 0.0
    %v371 = vand.u32 %v68, 4294901760
    %v372 = vsub.f32 %v68, %v371
    %v373 = vand.u32 %v372, 4294901760
    %374 = vmatmul.mubr.f32.gmra.mrb[0].mxu0 %v373
    %v375 = vpop.f32.mrb[0].mxu0
    %v376 = vadd.f32 %v301, %v375
    %v377 = vpop.f32.mrb[0].mxu0
    %378 = vdwg.mxu0
    %379 = vmatprep.subr.mxu0 0.0
    %v380 = vand.u32 %v64, 4294901760
    %v381 = vsub.f32 %v64, %v380
    %v382 = vand.u32 %v381, 4294901760
    %383 = vmatpush1.msra.mxu0 %v382
    %384 = vmatprep.subr.mxu0 0.0
    %v385 = vand.u32 %v65, 4294901760
    %v386 = vsub.f32 %v65, %v385
    %v387 = vand.u32 %v386, 4294901760
    %388 = vmatpush1.msra.mxu0 %v387
    %389 = vmatprep.subr.mxu0 0.0
    %390 = vmatpush1.msra.mxu0 0.0
    %391 = vmatprep.subr.mxu0 0.0
    %392 = vmatpush1.msra.mxu0 0.0
    %393 = vmatprep.subr.mxu0 0.0
    %394 = vmatpush1.msra.mxu0 0.0
    %395 = vmatprep.subr.mxu0 0.0
    %396 = vmatpush1.msra.mxu0 0.0
    %397 = vmatprep.subr.mxu0 0.0
    %398 = vmatpush1.msra.mxu0 0.0
    %399 = vmatprep.subr.mxu0 0.0
    %400 = vmatpush1.msra.mxu0 0.0
    %401 = vmatprep.subr.mxu0 0.0
    %402 = vmatpush1.msra.mxu0 0.0
    %403 = vmatprep.subr.mxu0 0.0
    %404 = vmatpush1.msra.mxu0 0.0
    %405 = vmatprep.subr.mxu0 0.0
    %406 = vmatpush1.msra.mxu0 0.0
    %407 = vmatprep.subr.mxu0 0.0
    %408 = vmatpush1.msra.mxu0 0.0
    %409 = vmatprep.subr.mxu0 0.0
    %410 = vmatpush1.msra.mxu0 0.0
    %411 = vmatprep.subr.mxu0 0.0
    %412 = vmatpush1.msra.mxu0 0.0
    %413 = vmatprep.subr.mxu0 0.0
    %414 = vmatpush1.msra.mxu0 0.0
    %415 = vmatprep.subr.mxu0 0.0
    %416 = vmatpush1.msra.mxu0 0.0
    %417 = vmatprep.subr.mxu0 0.0
    %418 = vmatpush1.msra.mxu0 0.0
    %419 = vmatprep.subr.mxu0 0.0
    %420 = vmatpush1.msra.mxu0 0.0
    %421 = vmatprep.subr.mxu0 0.0
    %422 = vmatpush1.msra.mxu0 0.0
    %423 = vmatprep.subr.mxu0 0.0
    %424 = vmatpush1.msra.mxu0 0.0
    %425 = vmatprep.subr.mxu0 0.0
    %426 = vmatpush1.msra.mxu0 0.0
    %427 = vmatprep.subr.mxu0 0.0
    %428 = vmatpush1.msra.mxu0 0.0
    %429 = vmatprep.subr.mxu0 0.0
    %430 = vmatpush1.msra.mxu0 0.0
    %431 = vmatprep.subr.mxu0 0.0
    %432 = vmatpush1.msra.mxu0 0.0
    %433 = vmatprep.subr.mxu0 0.0
    %434 = vmatpush1.msra.mxu0 0.0
    %435 = vmatprep.subr.mxu0 0.0
    %436 = vmatpush1.msra.mxu0 0.0
    %437 = vmatprep.subr.mxu0 0.0
    %438 = vmatpush1.msra.mxu0 0.0
    %439 = vmatprep.subr.mxu0 0.0
    %440 = vmatpush1.msra.mxu0 0.0
    %441 = vmatprep.subr.mxu0 0.0
    %442 = vmatpush1.msra.mxu0 0.0
    %443 = vmatprep.subr.mxu0 0.0
    %444 = vmatpush1.msra.mxu0 0.0
    %445 = vmatprep.subr.mxu0 0.0
    %446 = vmatpush1.msra.mxu0 0.0
    %447 = vmatprep.subr.mxu0 0.0
    %448 = vmatpush1.msra.mxu0 0.0
    %449 = vmatprep.mubr.f32.mxu0 0.0
    %v450 = vand.u32 %v68, 4294901760
    %451 = vmatmul.mubr.f32.gmra.mrb[0].mxu0 %v450
    %v452 = vpop.f32.mrb[0].mxu0
    %v453 = vadd.f32 %v376, %v452
    %v454 = vpop.f32.mrb[0].mxu0
    %455 = vdwg.mxu0
    %456 = vmatprep.subr.mxu0 0.0
    %v457 = vand.u32 %v64, 4294901760
    %458 = vmatpush1.msra.mxu0 %v457
    %459 = vmatprep.subr.mxu0 0.0
    %v460 = vand.u32 %v65, 4294901760
    %461 = vmatpush1.msra.mxu0 %v460
    %462 = vmatprep.subr.mxu0 0.0
    %463 = vmatpush1.msra.mxu0 0.0
    %464 = vmatprep.subr.mxu0 0.0
    %465 = vmatpush1.msra.mxu0 0.0
    %466 = vmatprep.subr.mxu0 0.0
    %467 = vmatpush1.msra.mxu0 0.0
    %468 = vmatprep.subr.mxu0 0.0
    %469 = vmatpush1.msra.mxu0 0.0
    %470 = vmatprep.subr.mxu0 0.0
    %471 = vmatpush1.msra.mxu0 0.0
    %472 = vmatprep.subr.mxu0 0.0
    %473 = vmatpush1.msra.mxu0 0.0
    %474 = vmatprep.subr.mxu0 0.0
    %475 = vmatpush1.msra.mxu0 0.0
    %476 = vmatprep.subr.mxu0 0.0
    %477 = vmatpush1.msra.mxu0 0.0
    %478 = vmatprep.subr.mxu0 0.0
    %479 = vmatpush1.msra.mxu0 0.0
    %480 = vmatprep.subr.mxu0 0.0
    %481 = vmatpush1.msra.mxu0 0.0
    %482 = vmatprep.subr.mxu0 0.0
    %483 = vmatpush1.msra.mxu0 0.0
    %484 = vmatprep.subr.mxu0 0.0
    %485 = vmatpush1.msra.mxu0 0.0
    %486 = vmatprep.subr.mxu0 0.0
    %487 = vmatpush1.msra.mxu0 0.0
    %488 = vmatprep.subr.mxu0 0.0
    %489 = vmatpush1.msra.mxu0 0.0
    %490 = vmatprep.subr.mxu0 0.0
    %491 = vmatpush1.msra.mxu0 0.0
    %492 = vmatprep.subr.mxu0 0.0
    %493 = vmatpush1.msra.mxu0 0.0
    %494 = vmatprep.subr.mxu0 0.0
    %495 = vmatpush1.msra.mxu0 0.0
    %496 = vmatprep.subr.mxu0 0.0
    %497 = vmatpush1.msra.mxu0 0.0
    %498 = vmatprep.subr.mxu0 0.0
    %499 = vmatpush1.msra.mxu0 0.0
    %500 = vmatprep.subr.mxu0 0.0
    %501 = vmatpush1.msra.mxu0 0.0
    %502 = vmatprep.subr.mxu0 0.0
    %503 = vmatpush1.msra.mxu0 0.0
    %504 = vmatprep.subr.mxu0 0.0
    %505 = vmatpush1.msra.mxu0 0.0
    %506 = vmatprep.subr.mxu0 0.0
    %507 = vmatpush1.msra.mxu0 0.0
    %508 = vmatprep.subr.mxu0 0.0
    %509 = vmatpush1.msra.mxu0 0.0
    %510 = vmatprep.subr.mxu0 0.0
    %511 = vmatpush1.msra.mxu0 0.0
    %512 = vmatprep.subr.mxu0 0.0
    %513 = vmatpush1.msra.mxu0 0.0
    %514 = vmatprep.subr.mxu0 0.0
    %515 = vmatpush1.msra.mxu0 0.0
    %516 = vmatprep.subr.mxu0 0.0
    %517 = vmatpush1.msra.mxu0 0.0
    %518 = vmatprep.subr.mxu0 0.0
    %519 = vmatpush1.msra.mxu0 0.0
    %520 = vmatprep.subr.mxu0 0.0
    %521 = vmatpush1.msra.mxu0 0.0
    %522 = vmatprep.mubr.f32.mxu0 0.0
    %v523 = vand.u32 %v68, 4294901760
    %524 = vmatmul.mubr.f32.gmra.mrb[0].mxu0 %v523
    %v525 = vpop.f32.mrb[0].mxu0
    %v526 = vadd.f32 %v453, %v525
    %v527 = vpop.f32.mrb[0].mxu0
    %528 = vdwg.mxu0
    %v529 = vmul.f32 %v526, %v526
    %vm530 = vcmask 1042432
    %v531 = vsel %vm530, %v529, 0.0
    %v532 = vrot.slane %v531, 4
    %v533 = vadd.f32 %v531, %v532
    %v534 = vrot.slane %v533, 2
    %v535 = vadd.f32 %v533, %v534
    %v536 = vrot.slane %v535, 1
    %v537 = vadd.f32 %v535, %v536
    %v538 = vrot.slane %v39, 1
    %vm539 = vcmp.eq.s32.totalorder %v39, %v538
    %v540 = vrsqrt.pop %v537
    %v541 = vmul.f32 %v537, %v540
    %vm542 = vcmp.eq.f32.partialorder %v537, inf
    %v543 = vsel %vm542, %v537, %v541
    %vm544 = vcmp.eq.f32.partialorder %v537, 0.0
    %v545 = vand.u32 %v537, 2147483648
    %v546 = vsel %vm544, %v545, %v543
    %v547 = vsel %vm539, 0.0, %v546
    %548 = vst [vmem:[#allocation7] sm:$0x7] %v526
    %549 = vst [vmem:[#allocation8] sm:$0x1] %v547
    // Predicated region
    $region18: #{tpu_custom_call.1} parent=1 // pred_check
      _
    $region19: #{tpu_custom_call.1} parent=1 // pred_check_branch
      %551 = sbr.rel (0) target = $region21
    $region20: #{tpu_custom_call.1} parent=1 // pred_region
      %s553 = ssub.s32 64, 64
      %554 = vsyncadd [#allocation4], %s553
      %s556 = sshll.u32 [#allocation7], 4
      %s557 = int_to_ptr.vmem [resolvable:$true] %s556
      %559 = dma.vmem_to_hbm [thread:$0]  %s557, 64, %s2, [#allocation4]
    $region21: #{tpu_custom_call.1} parent=1 // pred_fallthru
      _
    // Predicated region
    $region22: #{tpu_custom_call.1} parent=1 // pred_check
      _
    $region23: #{tpu_custom_call.1} parent=1 // pred_check_branch
      %561 = sbr.rel (0) target = $region25
    $region24: #{tpu_custom_call.1} parent=1 // pred_region
      %s563 = ssub.s32 16, 16
      %564 = vsyncadd [#allocation9], %s563
      %s566 = sshll.u32 [#allocation8], 4
      %s567 = int_to_ptr.vmem [resolvable:$true] %s566
      %569 = dma.vmem_to_hbm [thread:$0]  %s567, 16, %s3, [#allocation9]
    $region25: #{tpu_custom_call.1} parent=1 // pred_fallthru
      _
    // Predicated region
    $region26: #{tpu_custom_call.1} parent=1 // pred_check
      _
    $region27: #{tpu_custom_call.1} parent=1 // pred_check_branch
      %571 = sbr.rel (0) target = $region29
    $region28: #{tpu_custom_call.1} parent=1 // pred_region
      %572 = dma.done [#allocation4], 64
    $region29: #{tpu_custom_call.1} parent=1 // pred_fallthru
      _
    // Predicated region
    $region30: #{tpu_custom_call.1} parent=1 // pred_check
      _
    $region31: #{tpu_custom_call.1} parent=1 // pred_check_branch
      %574 = sbr.rel (0) target = $region33
    $region32: #{tpu_custom_call.1} parent=1 // pred_region
      %575 = dma.done [#allocation9], 16
    $region33: #{tpu_custom_call.1} parent=1 // pred_fallthru
      _
    %576 = vsyncpa [#allocation3], 1
    %577 = vsyncpa [#allocation6], 1
    %578 = vsyncpa [#allocation4], 1
    %579 = vsyncpa [#allocation9], 1

</llo_original>
